<compile_context>
chip_gen: v6e
topology: v6e:2x2x1
jax: 0.10.0
libtpu: 0.0.40
codegen_flags: <defaults>
</compile_context>

<pallas_src>
import functools

import numpy as np
import jax
import jax.numpy as jnp
from jax.experimental import pallas as pl

SUBLANE = 8
LANE = 128


def _make_clothes_mask_kernel(smoothness: float):
    """Build the elementwise kernel with 1/smoothness baked in as a compile-time constant."""
    inv_s = 1.0 / float(smoothness)  # matches torch's x / smoothness up to ~1 ulp

    def kernel(mask_ref, out_ref):
        # Single whole-array VMEM block: (rows_padded, 128) f32.
        out_ref[...] = (jnp.tanh(mask_ref[...] * inv_s) + 1.0) * 0.5

    return kernel


@functools.partial(jax.jit, static_argnames=("smoothness",))
def clothes_mask_forward(mask_1d: jax.Array, smoothness: float = 1.0) -> jax.Array:
    """Pallas implementation of ClothesMask.forward(). Returns an array of the same 1-D shape."""
    size = mask_1d.shape[0]
    rows = -(-size // LANE)                          # ceil(size / 128)
    rows_padded = -(-rows // SUBLANE) * SUBLANE      # round rows up to a multiple of 8
    padded_len = rows_padded * LANE

    # Cheap pad (single XLA pad op) + reshape to a lane-aligned 2-D slab.
    mask_2d = jnp.pad(mask_1d.astype(jnp.float32),
                      (0, padded_len - size)).reshape(rows_padded, LANE)

    # Grid-less pallas_call: the entire padded array is one VMEM block, processed in one shot.
    out_2d = pl.pallas_call(
        _make_clothes_mask_kernel(smoothness),
        out_shape=jax.ShapeDtypeStruct((rows_padded, LANE), jnp.float32),
        input_output_aliases={0: 0},   # reuse the padded input buffer for the output
    )(mask_2d)

    # Padded tail elements hold tanh(0)*0.5+0.5 = 0.5 but are sliced off here.
    return out_2d.reshape(-1)[:size]


def init_clothes_mask(size: int = 25193,
                      clothes_type: str = "overall",
                      scale_init: float = 1.0) -> np.ndarray:
    """Deterministic, synthetic re-creation of ClothesMask.__init__ (hip_values=None branch).

    The real module indexes the mask with SMPLX segmentation ids loaded from disk assets.
    """
    # TODO(synk): real SMPLX dense segmentation ids come from pickled/npy assets; synthetic ranges used.
    negative_scale = -10.0 * scale_init
    mask = np.full((size,), negative_scale, dtype=np.float32)

    # synthetic "segments" (deterministic index ranges of plausible sizes)
    dense_upper_ids = np.arange(0, 4000)
    dense_arms_ids = np.arange(4000, 7000)
    dense_bottom_ids = np.arange(7000, 13000)
    dense_shorts_ids = np.arange(7000, 10000)
    dense_shoes_ids = np.arange(13000, 14500)

    if clothes_type == "upper-long":
        mask[np.concatenate([dense_upper_ids, dense_arms_ids])] = scale_init
        mask[np.arange(14500, 16000)] = 0.5 * scale_init          # "hips"
    elif clothes_type == "pants-long":
        mask[dense_bottom_ids] = scale_init
    elif clothes_type == "pants-short":
        mask[dense_shorts_ids] = scale_init
    elif clothes_type == "overall":
        mask[dense_bottom_ids] = scale_init
        mask[np.concatenate([dense_upper_ids, dense_arms_ids])] = scale_init
    elif clothes_type == "shoes":
        mask[dense_shoes_ids] = scale_init
    return mask


if __name__ == "__main__":
    key = jax.random.PRNGKey(0)

    size = 25193          # module default
    smoothness = 1.0
    scale_init = 1.0

    mask_np = init_clothes_mask(size=size, clothes_type="overall", scale_init=scale_init)
    # tiny deterministic perturbation so values aren't just two constants
    mask_np = mask_np + 0.01 * np.asarray(
        jax.random.normal(key, (size,), dtype=jnp.float32))
    mask = jnp.asarray(mask_np, dtype=jnp.float32)

    out = clothes_mask_forward(mask, smoothness)
    out = jax.block_until_ready(out)

    # reference check (plain JAX, same math as the PyTorch module)
    ref = (jnp.tanh(mask / smoothness) + 1.0) * 0.5
    np.testing.assert_allclose(np.asarray(out), np.asarray(ref), rtol=1e-5, atol=1e-5)
    assert out.shape == (size,) and out.dtype == jnp.float32

    print("KERNEL_OK")
</pallas_src>

<mosaic_0001>
module attributes {stable_mosaic.version = 11 : i64} {
  func.func @kernel(%arg0: memref<200x128xf32, #tpu.memory_space<vmem>>, %arg1: memref<200x128xf32, #tpu.memory_space<vmem>>) attributes {dimension_semantics = [], scalar_prefetch = 0 : i64, scratch_operands = 0 : i64, tpu.core_type = #tpu.core_type<tc>} {
    %c0 = arith.constant 0 : index
    %c0_0 = arith.constant 0 : index
    %0 = vector.load %arg0[%c0, %c0_0] : memref<200x128xf32, #tpu.memory_space<vmem>>, vector<200x128xf32>
    %cst = arith.constant 1.000000e+00 : f32
    %1 = vector.broadcast %cst : f32 to vector<200x128xf32>
    %2 = arith.mulf %0, %1 : vector<200x128xf32>
    %3 = math.tanh %2 : vector<200x128xf32>
    %cst_1 = arith.constant 1.000000e+00 : f32
    %4 = vector.broadcast %cst_1 : f32 to vector<200x128xf32>
    %5 = arith.addf %3, %4 : vector<200x128xf32>
    %cst_2 = arith.constant 5.000000e-01 : f32
    %6 = vector.broadcast %cst_2 : f32 to vector<200x128xf32>
    %7 = arith.mulf %5, %6 : vector<200x128xf32>
    %c0_3 = arith.constant 0 : index
    %c0_4 = arith.constant 0 : index
    %8 = vector.load %arg1[%c0_3, %c0_4] : memref<200x128xf32, #tpu.memory_space<vmem>>, vector<200x128xf32>
    tpu.vector_store %arg1[%c0_3, %c0_4], %7 {strides = array<i32>} : memref<200x128xf32, #tpu.memory_space<vmem>>, vector<200x128xf32>,
    return
  }
}

</mosaic_0001>

<llo_original>
// kernel: clothes_mask_forward.1
$region0: #{clothes_mask_forward.1}
  #allocation0 [shape = 'u32[]', space=smem, size = 0x4, offset = 0x4, fixed_abs, tag = 'smem constant byte address 0x4 - core index']
  #allocation1 [shape = 'u32[144,128]{1,0:T(1,128)}', space=vmem, size = 0x12000, scoped, tag = 'internal scratch']
  %s0 = inlined_call_operand.vmem [shape: f32[200,128], index: 0, kind: input, shape index: {}, may-alias: {0,1}]
  %s1 = inlined_call_operand.vmem [shape: f32[200,128], index: 1, kind: output, shape index: {}, may-alias: {0,1}]
  %s2 = sld [smem:[#allocation0]]
  $region14: #{clothes_mask_forward.1} parent=0
    _
  %s4 = ssub.s32 1, %s2
  %s5 = scalar_select 0, %s4, %s2
  // Predicated region
  $region2: #{clothes_mask_forward.1} parent=0 // pred_check
    _
  $region3: #{clothes_mask_forward.1} parent=0 // pred_check_branch
    %7 = sbr.rel (0) target = $region5
  $region4: #{clothes_mask_forward.1} parent=0 // pred_region
    _
  $region5: #{clothes_mask_forward.1} parent=0 // pred_fallthru
    _
  %v8 = vld [vmem:[%s0] sm:$0xff]
  %v9 = vld [vmem:[%s0 + $0x8] sm:$0xff]
  %v10 = vld [vmem:[%s0 + $0x10] sm:$0xff]
  %v11 = vld [vmem:[%s0 + $0x18] sm:$0xff]
  %v12 = vld [vmem:[%s0 + $0x20] sm:$0xff]
  %v13 = vld [vmem:[%s0 + $0x28] sm:$0xff]
  %v14 = vld [vmem:[%s0 + $0x30] sm:$0xff]
  %v15 = vld [vmem:[%s0 + $0x38] sm:$0xff]
  %v16 = vld [vmem:[%s0 + $0x40] sm:$0xff]
  %v17 = vld [vmem:[%s0 + $0x48] sm:$0xff]
  %v18 = vld [vmem:[%s0 + $0x50] sm:$0xff]
  %v19 = vld [vmem:[%s0 + $0x58] sm:$0xff]
  %v20 = vld [vmem:[%s0 + $0x60] sm:$0xff]
  %v21 = vld [vmem:[%s0 + $0x68] sm:$0xff]
  %v22 = vld [vmem:[%s0 + $0x70] sm:$0xff]
  %v23 = vld [vmem:[%s0 + $0x78] sm:$0xff]
  %v24 = vld [vmem:[%s0 + $0x80] sm:$0xff]
  %v25 = vld [vmem:[%s0 + $0x88] sm:$0xff]
  %v26 = vld [vmem:[%s0 + $0x90] sm:$0xff]
  %v27 = vld [vmem:[%s0 + $0x98] sm:$0xff]
  %v28 = vld [vmem:[%s0 + $0xa0] sm:$0xff]
  %v29 = vld [vmem:[%s0 + $0xa8] sm:$0xff]
  %v30 = vld [vmem:[%s0 + $0xb0] sm:$0xff]
  %v31 = vld [vmem:[%s0 + $0xb8] sm:$0xff]
  %v32 = vld [vmem:[%s0 + $0xc0] sm:$0xff]
  %v33 = vtanh.pop %v8
  %v34 = vtanh.pop %v9
  %v35 = vtanh.pop %v10
  %v36 = vtanh.pop %v11
  %v37 = vtanh.pop %v12
  %v38 = vtanh.pop %v13
  %v39 = vtanh.pop %v14
  %v40 = vtanh.pop %v15
  %v41 = vtanh.pop %v16
  %v42 = vtanh.pop %v17
  %v43 = vtanh.pop %v18
  %v44 = vtanh.pop %v19
  %v45 = vtanh.pop %v20
  %v46 = vtanh.pop %v21
  %v47 = vtanh.pop %v22
  %v48 = vtanh.pop %v23
  %v49 = vtanh.pop %v24
  %v50 = vtanh.pop %v25
  %v51 = vtanh.pop %v26
  %v52 = vtanh.pop %v27
  %v53 = vtanh.pop %v28
  %v54 = vtanh.pop %v29
  %v55 = vtanh.pop %v30
  %v56 = vtanh.pop %v31
  %v57 = vtanh.pop %v32
  %v58 = vadd.f32 %v33, 1.0
  %v59 = vadd.f32 %v34, 1.0
  %v60 = vadd.f32 %v35, 1.0
  %v61 = vadd.f32 %v36, 1.0
  %v62 = vadd.f32 %v37, 1.0
  %v63 = vadd.f32 %v38, 1.0
  %v64 = vadd.f32 %v39, 1.0
  %v65 = vadd.f32 %v40, 1.0
  %v66 = vadd.f32 %v41, 1.0
  %v67 = vadd.f32 %v42, 1.0
  %v68 = vadd.f32 %v43, 1.0
  %v69 = vadd.f32 %v44, 1.0
  %v70 = vadd.f32 %v45, 1.0
  %v71 = vadd.f32 %v46, 1.0
  %v72 = vadd.f32 %v47, 1.0
  %v73 = vadd.f32 %v48, 1.0
  %v74 = vadd.f32 %v49, 1.0
  %v75 = vadd.f32 %v50, 1.0
  %v76 = vadd.f32 %v51, 1.0
  %v77 = vadd.f32 %v52, 1.0
  %v78 = vadd.f32 %v53, 1.0
  %v79 = vadd.f32 %v54, 1.0
  %v80 = vadd.f32 %v55, 1.0
  %v81 = vadd.f32 %v56, 1.0
  %v82 = vadd.f32 %v57, 1.0
  %v83 = vmul.f32 %v58, 0.5
  %v84 = vmul.f32 %v59, 0.5
  %v85 = vmul.f32 %v60, 0.5
  %v86 = vmul.f32 %v61, 0.5
  %v87 = vmul.f32 %v62, 0.5
  %v88 = vmul.f32 %v63, 0.5
  %v89 = vmul.f32 %v64, 0.5
  %v90 = vmul.f32 %v65, 0.5
  %v91 = vmul.f32 %v66, 0.5
  %v92 = vmul.f32 %v67, 0.5
  %v93 = vmul.f32 %v68, 0.5
  %v94 = vmul.f32 %v69, 0.5
  %v95 = vmul.f32 %v70, 0.5
  %v96 = vmul.f32 %v71, 0.5
  %v97 = vmul.f32 %v72, 0.5
  %v98 = vmul.f32 %v73, 0.5
  %v99 = vmul.f32 %v74, 0.5
  %v100 = vmul.f32 %v75, 0.5
  %v101 = vmul.f32 %v76, 0.5
  %v102 = vmul.f32 %v77, 0.5
  %v103 = vmul.f32 %v78, 0.5
  %v104 = vmul.f32 %v79, 0.5
  %v105 = vmul.f32 %v80, 0.5
  %v106 = vmul.f32 %v81, 0.5
  %v107 = vmul.f32 %v82, 0.5
  %108 = vst [vmem:[%s1] sm:$0xff] %v83
  %109 = vst [vmem:[%s1 + $0x8] sm:$0xff] %v84
  %110 = vst [vmem:[%s1 + $0x10] sm:$0xff] %v85
  %111 = vst [vmem:[%s1 + $0x18] sm:$0xff] %v86
  %112 = vst [vmem:[%s1 + $0x20] sm:$0xff] %v87
  %113 = vst [vmem:[%s1 + $0x28] sm:$0xff] %v88
  %114 = vst [vmem:[%s1 + $0x30] sm:$0xff] %v89
  %115 = vst [vmem:[%s1 + $0x38] sm:$0xff] %v90
  %116 = vst [vmem:[%s1 + $0x40] sm:$0xff] %v91
  %117 = vst [vmem:[%s1 + $0x48] sm:$0xff] %v92
  %118 = vst [vmem:[%s1 + $0x50] sm:$0xff] %v93
  %119 = vst [vmem:[%s1 + $0x58] sm:$0xff] %v94
  %120 = vst [vmem:[%s1 + $0x60] sm:$0xff] %v95
  %121 = vst [vmem:[%s1 + $0x68] sm:$0xff] %v96
  %122 = vst [vmem:[%s1 + $0x70] sm:$0xff] %v97
  %123 = vst [vmem:[%s1 + $0x78] sm:$0xff] %v98
  %124 = vst [vmem:[%s1 + $0x80] sm:$0xff] %v99
  %125 = vst [vmem:[%s1 + $0x88] sm:$0xff] %v100
  %126 = vst [vmem:[%s1 + $0x90] sm:$0xff] %v101
  %127 = vst [vmem:[%s1 + $0x98] sm:$0xff] %v102
  %128 = vst [vmem:[%s1 + $0xa0] sm:$0xff] %v103
  %129 = vst [vmem:[%s1 + $0xa8] sm:$0xff] %v104
  %130 = vst [vmem:[%s1 + $0xb0] sm:$0xff] %v105
  %131 = vst [vmem:[%s1 + $0xb8] sm:$0xff] %v106
  %132 = vst [vmem:[%s1 + $0xc0] sm:$0xff] %v107
  // Predicated region
  $region6: #{clothes_mask_forward.1} parent=0 // pred_check
    _
  $region7: #{clothes_mask_forward.1} parent=0 // pred_check_branch
    %134 = sbr.rel (0) target = $region9
  $region8: #{clothes_mask_forward.1} parent=0 // pred_region
    _
  $region9: #{clothes_mask_forward.1} parent=0 // pred_fallthru
    _
  // Predicated region
  $region10: #{clothes_mask_forward.1} parent=0 // pred_check
    _
  $region11: #{clothes_mask_forward.1} parent=0 // pred_check_branch
    %136 = sbr.rel (0) target = $region13
  $region12: #{clothes_mask_forward.1} parent=0 // pred_region
    _
  $region13: #{clothes_mask_forward.1} parent=0 // pred_fallthru
    _

</llo_original>
